<compile_context>
chip_gen: v7x
topology: tpu7x:2x2x1
jax: 0.10.0
libtpu: 0.0.40
codegen_flags: <defaults>
</compile_context>

<pallas_src>
import jax
import jax.numpy as jnp
from jax.experimental import pallas as pl
from jax.experimental.pallas import tpu as pltpu


def _round_up(x, m):
    return ((x + m - 1) // m) * m


def _vmem_capacity_bytes():
    try:
        info = pltpu.get_tpu_info()
        cap = getattr(info, "vmem_capacity_bytes", None)
        if cap:
            return int(cap)
    except Exception:
        pass
    return 64 * 1024 * 1024  # conservative: v7x per-TensorCore VMEM


def _choose_tiles(B, D, Cp, cap):
    """Generation-aware tile sizing from the VMEM capacity."""
    budget = min(cap // 2, 40 << 20)         # buffer budget, leaves compiler headroom
    d_lane = _round_up(D, 128)               # lane-padded feats width inside VMEM

    # Class tile: keep the whole (D, Cp) bf16 weight resident when small,
    # otherwise stream it in lane-dense C tiles (double-buffered).
    if D * Cp * 2 <= min(8 << 20, budget // 2):
        TC, n_wbuf = Cp, 1
    else:
        TC, n_wbuf = 128, 2
        for t in (1024, 512, 256, 128):
            if Cp % t == 0 and 2 * D * t * 2 <= budget // 2:
                TC = t
                break

    def vmem_bytes(tb):
        return (2 * tb * d_lane * 4                      # feats f32, double-buffered
                + tb * d_lane * 2                        # normalized bf16 scratch
                + n_wbuf * _round_up(D, 16) * TC * 2     # bf16 weight tile(s)
                + 2 * _round_up(TC, 128) * 4             # bias
                + 2 * tb * TC * 4)                       # out f32, double-buffered

    TB = 8
    for cand in (1024, 512, 256, 128, 64, 32, 16, 8):
        if vmem_bytes(cand) <= budget:
            TB = cand
            break
    # Keep >= 2 batch grid steps when the batch allows it (v7x has 2 TCs; a
    # single-step "parallel" axis would leave one idle).
    bp8 = _round_up(max(B, 1), 8)
    while TB > 8 and bp8 <= TB:
        TB //= 2

    vmem_limit = int(vmem_bytes(TB) * 1.5) + (8 << 20)
    vmem_limit = max(32 << 20, min(vmem_limit, cap - (4 << 20)))
    return TB, TC, n_wbuf, vmem_limit


# ----------------------------------------------------------------------------
# Pallas kernel: fused L2-normalize (dim=1) + linear classifier head.
# Grid: (batch tiles [parallel], class tiles [arbitrary, innermost]).
# Tiles: feats (TB, D) f32 (resident across the class axis), weight (D, TC)
# bf16, bias (1, TC) f32, output (TB, TC) f32. Scratch: (TB, D) bf16 holding
# the normalized rows, computed once per batch tile.
# ----------------------------------------------------------------------------
def _normalize_fc_kernel(feat_ref, w_ref, b_ref, out_ref, xs_ref):
    # Once per batch tile (class tile j == 0): f32 sum-of-squares + EUP rsqrt
    # (eps clamp on the squared norm == torch's max(||x||, 1e-12)), then scale
    # and cast to bf16 into the scratch reused by every class tile.  Scaling
    # the (TB, D) rows once replaces scaling every (TB, TC) output tile and
    # fuses with the required bf16 cast of the MXU operand.
    @pl.when(pl.program_id(1) == 0)
    def _():
        x = feat_ref[...].astype(jnp.float32)                 # (TB, D)
        sq = jnp.sum(x * x, axis=1, keepdims=True)            # (TB, 1), f32
        s = jax.lax.rsqrt(jnp.maximum(sq, 1e-24))             # EUP rsqrt
        xs_ref[...] = (x * s).astype(xs_ref.dtype)            # bf16 operand

    y = jnp.dot(xs_ref[...], w_ref[...],                      # bf16 x bf16 -> f32
                preferred_element_type=jnp.float32)           # (TB, TC)
    out_ref[...] = (y + b_ref[...].astype(jnp.float32)).astype(out_ref.dtype)


def prepare_classifier_params(fc_weight, fc_bias):
    """One-time parameter prep, hoisted out of the per-call path.

    fc_weight: torch-layout (num_classes, D) Linear weight.
    fc_bias:   (num_classes,).
    Returns (w_p, b_p): bf16 (D, Cp) transposed weight and f32 (1, Cp) bias with
    the class dim zero-padded to a multiple of 128 (lane-dense, unmasked output
    stores).  D is NOT padded — the kernel uses full-D blocks instead.
    """
    C, D = fc_weight.shape
    Cp = _round_up(max(C, 128), 128)
    w_p = jnp.zeros((D, Cp), jnp.bfloat16).at[:, :C].set(
        fc_weight.T.astype(jnp.bfloat16))
    b_p = jnp.zeros((1, Cp), jnp.float32).at[0, :C].set(fc_bias.astype(jnp.float32))
    return w_p, b_p


def linear_classifier_head(feats, w_p, b_p, num_classes):
    """feats: (B, D) encoder features; w_p/b_p from prepare_classifier_params."""
    B, D = feats.shape
    Dw, Cp = w_p.shape
    assert D == Dw

    cap = _vmem_capacity_bytes()
    TB, TC, _n_wbuf, vmem_limit = _choose_tiles(B, D, Cp, cap)

    # Only the batch dim is ever padded, and only when TB does not divide B.
    Bp = _round_up(B, TB)
    feats_in = feats if Bp == B else jnp.zeros((Bp, D), feats.dtype).at[:B].set(feats)

    nb, nc = Bp // TB, Cp // TC
    # NOTE: for tiny batches (1-2 grid steps, like this demo) the fixed
    # pallas_call overhead dominates; production code would fall back to XLA.

    resident_w = (nc == 1)

    def _w_spec():
        shape, imap = (D, TC), (lambda i, j: (0, j))
        if resident_w and D * TC * 2 > (2 << 20):
            # Single-buffer the never-changing resident weight (halves its
            # VMEM footprint; matters most under v7x's 64 MiB budget).
            try:
                return pl.BlockSpec(shape, imap, pipeline_mode=pl.Buffered(1))
            except TypeError:
                pass
        return pl.BlockSpec(shape, imap)

    out_p = pl.pallas_call(
        _normalize_fc_kernel,
        out_shape=jax.ShapeDtypeStruct((Bp, Cp), jnp.float32),
        grid=(nb, nc),
        in_specs=[
            pl.BlockSpec((TB, D), lambda i, j: (i, 0)),   # feats tile (resident over j)
            _w_spec(),                                    # weight tile / resident weight
            pl.BlockSpec((1, TC), lambda i, j: (0, j)),   # bias tile
        ],
        out_specs=pl.BlockSpec((TB, TC), lambda i, j: (i, j)),
        scratch_shapes=[pltpu.VMEM((TB, D), jnp.bfloat16)],
        compiler_params=pltpu.CompilerParams(
            dimension_semantics=("parallel", "arbitrary"),
            vmem_limit_bytes=vmem_limit,
        ),
    )(feats_in, w_p, b_p)
    return out_p[:B, :num_classes]


# ----------------------------------------------------------------------------
# Synthetic encoder stub (glue, plain JAX). The real encoder is an external
# module passed into LinearClassifier; here a deterministic stand-in (global
# average pool + linear projection) produces features with feature_dim = D.
# TODO(synk): the encoder backbone is external to this module and is not
#             reimplemented here.
# ----------------------------------------------------------------------------
def encoder_stub(x, w_enc):
    # x: (B, C, H, W) NCHW  ->  (B, D)
    pooled = jnp.mean(x, axis=(2, 3))          # (B, C)
    return pooled @ w_enc                      # (B, D)


def trunc_normal(key, shape, std):
    # matches torch.nn.init.trunc_normal_ default: truncated at +/- 2 std
    return std * jax.random.truncated_normal(key, -2.0, 2.0, shape, jnp.float32)


if __name__ == "__main__":
    key = jax.random.PRNGKey(0)
    k_x, k_enc, k_w, k_b = jax.random.split(key, 4)

    B, Cin, H, W = 2, 4, 16, 16          # image input (NCHW)
    D = 32                               # encoder.feature_dim
    NUM_CLASSES = 10

    x = jax.random.normal(k_x, (B, Cin, H, W), jnp.float32)

    # deterministic parameters
    w_enc = jax.random.normal(k_enc, (Cin, D), jnp.float32) / jnp.sqrt(Cin)
    # fc: nn.Linear(D, NUM_CLASSES); torch weight layout is (C, D)
    fc_w = trunc_normal(k_w, (NUM_CLASSES, D), std=2e-05)          # (C, D)
    bound = 1.0 / jnp.sqrt(D)                                      # torch Linear bias init
    fc_b = jax.random.uniform(k_b, (NUM_CLASSES,), jnp.float32, -bound, bound)

    # one-time parameter prep (padding / bf16 cast hoisted out of per-call path)
    w_p, b_p = prepare_classifier_params(fc_w, fc_b)

    # forward
    feats = encoder_stub(x, w_enc)                                 # (B, D)
    out = linear_classifier_head(feats, w_p, b_p, NUM_CLASSES)     # (B, C)
    out = jax.block_until_ready(out)

    # reference check in plain JAX (exact torch F.normalize semantics, f32 fc)
    feats_n = feats / jnp.maximum(
        jnp.sqrt(jnp.sum(feats * feats, axis=1, keepdims=True)), 1e-12)
    ref = feats_n @ fc_w.T + fc_b
    assert out.shape == (B, NUM_CLASSES)
    # bf16 MXU operands: error at these scales is ~1e-7, well inside tolerance
    assert jnp.allclose(out, ref, atol=5e-5, rtol=1e-4), \
        float(jnp.max(jnp.abs(out - ref)))

    print("KERNEL_OK")
</pallas_src>

<mosaic_0001>
module attributes {stable_mosaic.version = 11 : i64} {
  func.func @_normalize_fc_kernel(%arg0: i32, %arg1: i32, %arg2: memref<8x32xf32, #tpu.memory_space<vmem>>, %arg3: memref<32x128xbf16, #tpu.memory_space<vmem>>, %arg4: memref<1x128xf32, #tpu.memory_space<vmem>>, %arg5: memref<8x128xf32, #tpu.memory_space<vmem>>, %arg6: memref<8x32xbf16, #tpu.memory_space<vmem>>) attributes {dimension_semantics = [#tpu.dimension_semantics<parallel>, #tpu.dimension_semantics<arbitrary>], iteration_bounds = array<i64: 1, 1>, scalar_prefetch = 0 : i64, scratch_operands = 1 : i64, tpu.core_type = #tpu.core_type<tc>, window_params = [{transform_indices = @transform_0, window_bounds = array<i64: 8, 32>}, {transform_indices = @transform_1, window_bounds = array<i64: 32, 128>}, {transform_indices = @transform_2, window_bounds = array<i64: 1, 128>}, {transform_indices = @transform_3, window_bounds = array<i64: 8, 128>}]} {
    %c0_i32 = arith.constant 0 : i32
    %0 = arith.cmpi eq, %arg1, %c0_i32 : i32
    %1 = arith.extui %0 : i1 to i32
    %c0_i32_0 = arith.constant 0 : i32
    %2 = arith.cmpi ne, %1, %c0_i32_0 : i32
    scf.if %2 {
      %c0_8 = arith.constant 0 : index
      %c0_9 = arith.constant 0 : index
      %10 = vector.load %arg2[%c0_8, %c0_9] : memref<8x32xf32, #tpu.memory_space<vmem>>, vector<8x32xf32>
      %11 = arith.mulf %10, %10 : vector<8x32xf32>
      %cst_10 = arith.constant dense<0.000000e+00> : vector<8xf32>
      %12 = vector.multi_reduction <add>, %11, %cst_10 [1] : vector<8x32xf32> to vector<8xf32>
      %13 = vector.shape_cast %12 : vector<8xf32> to vector<8x1xf32>
      %cst_11 = arith.constant 1.000000e-24 : f32
      %14 = vector.broadcast %cst_11 : f32 to vector<8x1xf32>
      %15 = arith.maximumf %13, %14 : vector<8x1xf32>
      %16 = math.rsqrt %15 : vector<8x1xf32>
      %17 = vector.broadcast %16 : vector<8x1xf32> to vector<8x32xf32>
      %18 = arith.mulf %10, %17 : vector<8x32xf32>
      %19 = arith.truncf %18 : vector<8x32xf32> to vector<8x32xbf16>
      %c0_12 = arith.constant 0 : index
      %c0_13 = arith.constant 0 : index
      %20 = vector.load %arg6[%c0_12, %c0_13] : memref<8x32xbf16, #tpu.memory_space<vmem>>, vector<8x32xbf16>
      tpu.vector_store %arg6[%c0_12, %c0_13], %19 {strides = array<i32>} : memref<8x32xbf16, #tpu.memory_space<vmem>>, vector<8x32xbf16>,
    } else {
    }
    %c0 = arith.constant 0 : index
    %c0_1 = arith.constant 0 : index
    %3 = vector.load %arg6[%c0, %c0_1] : memref<8x32xbf16, #tpu.memory_space<vmem>>, vector<8x32xbf16>
    %c0_2 = arith.constant 0 : index
    %c0_3 = arith.constant 0 : index
    %4 = vector.load %arg3[%c0_2, %c0_3] : memref<32x128xbf16, #tpu.memory_space<vmem>>, vector<32x128xbf16>
    %cst = arith.constant dense<0.000000e+00> : vector<8x128xf32>
    %5 = tpu.matmul %3, %4, %cst {dimension_numbers = #tpu.dot_dimension_numbers<[1], [0], [0], [1], [0, 0, 1, 1], [], []>} : vector<8x32xbf16>, vector<32x128xbf16>, vector<8x128xf32> -> vector<8x128xf32>
    %c0_4 = arith.constant 0 : index
    %c0_5 = arith.constant 0 : index
    %6 = vector.load %arg4[%c0_4, %c0_5] : memref<1x128xf32, #tpu.memory_space<vmem>>, vector<1x128xf32>
    %7 = vector.broadcast %6 : vector<1x128xf32> to vector<8x128xf32>
    %8 = arith.addf %5, %7 : vector<8x128xf32>
    %c0_6 = arith.constant 0 : index
    %c0_7 = arith.constant 0 : index
    %9 = vector.load %arg5[%c0_6, %c0_7] : memref<8x128xf32, #tpu.memory_space<vmem>>, vector<8x128xf32>
    tpu.vector_store %arg5[%c0_6, %c0_7], %8 {strides = array<i32>} : memref<8x128xf32, #tpu.memory_space<vmem>>, vector<8x128xf32>,
    return
  }
  func.func @transform_0(%arg0: i32, %arg1: i32) -> (i32, i32) {
    %c0_i32 = arith.constant 0 : i32
    %c0_i32_0 = arith.constant 0 : i32
    return %arg0, %c0_i32 : i32, i32
  }
  func.func @transform_1(%arg0: i32, %arg1: i32) -> (i32, i32) {
    %c0_i32 = arith.constant 0 : i32
    %c0_i32_0 = arith.constant 0 : i32
    return %c0_i32, %arg1 : i32, i32
  }
  func.func @transform_2(%arg0: i32, %arg1: i32) -> (i32, i32) {
    %c0_i32 = arith.constant 0 : i32
    %c0_i32_0 = arith.constant 0 : i32
    return %c0_i32, %arg1 : i32, i32
  }
  func.func @transform_3(%arg0: i32, %arg1: i32) -> (i32, i32) {
    %c0_i32 = arith.constant 0 : i32
    return %arg0, %arg1 : i32, i32
  }
}

</mosaic_0001>

<llo_original>
// kernel: tpu_custom_call.1
$region0: #{tpu_custom_call.1}
  #allocation0 [shape = 'u32[]', space=smem, size = 0x4, offset = 0x4, fixed_abs, tag = 'smem constant byte address 0x4 - core index']
  #allocation1 [shape = 'u32[144,128]{1,0:T(1,128)}', space=vmem, size = 0x12000, scoped, tag = 'internal scratch']
  #allocation2 [shape = 'bf16[8,32]{1,0:T(8,128)(2,1)}', space=vmem, size = 0x800, scoped, tag = 'scratch operand']
  %s0 = inlined_call_operand.hbm [shape: f32[8,32], index: 0, kind: input, shape index: {}]
  %s1 = inlined_call_operand.hbm [shape: bf16[32,128], index: 1, kind: input, shape index: {}]
  %s2 = inlined_call_operand.vmem [shape: f32[1,128], index: 2, kind: input, shape index: {}]
  %s3 = inlined_call_operand.hbm [shape: f32[8,128], index: 3, kind: output, shape index: {}]
  %s4 = sld [smem:[#allocation0]]
  $region34: #{tpu_custom_call.1} parent=0
    _
  %s6 = ssub.s32 1, %s4
  %s7 = scalar_select 0, %s6, %s4
  $region1: #{tpu_custom_call.1} parent=0
    #allocation3 [shape = 'u8[4096]{0}', space=vmem, size = 0x1000, scoped, tag = 'input window, operand 0, single buffered']
    #allocation4 [shape = 's32[1]{0}', space=sflag, size = 0x4, scoped, tag = 'scoped memory for tpu_custom_call.1']
    #allocation5 [shape = 's32[1]{0}', space=sflag, size = 0x4, scoped, tag = 'scoped memory for tpu_custom_call.1']
    #allocation6 [shape = 'u8[8192]{0}', space=vmem, size = 0x2000, scoped, tag = 'input window, operand 1, single buffered']
    #allocation7 [shape = 's32[1]{0}', space=sflag, size = 0x4, scoped, tag = 'scoped memory for tpu_custom_call.1']
    #allocation8 [shape = 'u8[4096]{0}', space=vmem, size = 0x1000, scoped, tag = 'output window, operand 0, single buffered']
    %8 = vsyncpa [#allocation4], 0
    %9 = vsyncpa [#allocation7], 0
    %10 = vsyncpa [#allocation5], 0
    // Predicated region
    $region2: #{tpu_custom_call.1} parent=1 // pred_check
      _
    $region3: #{tpu_custom_call.1} parent=1 // pred_check_branch
      %12 = sbr.rel (0) target = $region5
    $region4: #{tpu_custom_call.1} parent=1 // pred_region
      %s14 = ssub.s32 128, 128
      %15 = vsyncadd [#allocation4], %s14
      %s17 = sshll.u32 [#allocation3], 4
      %s18 = int_to_ptr.vmem [resolvable:$true] %s17
      %20 = dma.hbm_to_vmem [thread:$0]  %s0, 128, %s18, [#allocation4]
    $region5: #{tpu_custom_call.1} parent=1 // pred_fallthru
      _
    // Predicated region
    $region6: #{tpu_custom_call.1} parent=1 // pred_check
      _
    $region7: #{tpu_custom_call.1} parent=1 // pred_check_branch
      %22 = sbr.rel (0) target = $region9
    $region8: #{tpu_custom_call.1} parent=1 // pred_region
      %s24 = ssub.s32 256, 256
      %25 = vsyncadd [#allocation7], %s24
      %s26 = sshll.u32 [#allocation6], 4
      %s27 = int_to_ptr.vmem [resolvable:$true] %s26
      %32 = dma.hbm_to_vmem [thread:$0]  %s1, 256, %s27, [#allocation7], 64, 64, 4
    $region9: #{tpu_custom_call.1} parent=1 // pred_fallthru
      _
    // Predicated region
    $region10: #{tpu_custom_call.1} parent=1 // pred_check
      _
    $region11: #{tpu_custom_call.1} parent=1 // pred_check_branch
      %34 = sbr.rel (0) target = $region13
    $region12: #{tpu_custom_call.1} parent=1 // pred_region
      _
    $region13: #{tpu_custom_call.1} parent=1 // pred_fallthru
      _
    // Predicated region
    $region14: #{tpu_custom_call.1} parent=1 // pred_check
      _
    $region15: #{tpu_custom_call.1} parent=1 // pred_check_branch
      %36 = sbr.rel (0) target = $region17
    $region16: #{tpu_custom_call.1} parent=1 // pred_region
      %37 = dma.done [#allocation4], 128
    $region17: #{tpu_custom_call.1} parent=1 // pred_fallthru
      _
    // Predicated region
    $region18: #{tpu_custom_call.1} parent=1 // pred_check
      _
    $region19: #{tpu_custom_call.1} parent=1 // pred_check_branch
      %39 = sbr.rel (0) target = $region21
    $region20: #{tpu_custom_call.1} parent=1 // pred_region
      %40 = dma.done [#allocation7], 256
    $region21: #{tpu_custom_call.1} parent=1 // pred_fallthru
      _
    %p42 = scmp.eq.s32.totalorder 0, 0
    // Predicated region
    $region22: #{tpu_custom_call.1} parent=1 // pred_check
      %p43 = pneg %p42
    $region23: #{tpu_custom_call.1} parent=1 // pred_check_branch
      %45 = sbr.rel (%p43) target = $region25
    $region24: #{tpu_custom_call.1} parent=1 // pred_region
      %v46 = vld [vmem:[#allocation3] sm:$0xff]
      %v47 = vmul.f32 %v46, %v46
      %vm48 = vcmask 261120
      %v49 = vsel %vm48, %v47, 0.0
      %50 = vadd.xlane.f32.xlu0 %v49
      %v51 = vpop.xlane.xlu0 %50
      %v52 = vmax.f32 %v51, 1e-24
      %v53 = vrsqrt.pop %v52
      %v54 = vmul.f32 %v46, %v53
      %v55 = vpack.c.bf16 %v54, %v54
      %vm56 = vcmask 257024
      %57 = vst.msk [vmem:[#allocation2] sm:$0xf] %vm56, %v55
    $region25: #{tpu_custom_call.1} parent=1 // pred_fallthru
      _
    %v58 = vld [vmem:[#allocation2] sm:$0xf]
    %v59 = vld [vmem:[#allocation6] sm:$0xf]
    %v60 = vld [vmem:[#allocation6 + $0x4] sm:$0xf]
    %v61 = vld [vmem:[#allocation6 + $0x8] sm:$0xf]
    %v62 = vld [vmem:[#allocation6 + $0xc] sm:$0xf]
    %v63 = vld [vmem:[%s2] sm:$0x1]
    %v65 = vlaneseq
    %v66 = vshrl.u32 %v65, 7
    %v67 = vsub.s32 0, %v66
    %v68 = vrot.slane %v63, %v67
    %v74 = vunpack.c.l.b16 %v59
    %v75 = vunpack.c.l.b16 %v60
    %v76 = vunpack.c.l.b16 %v61
    %v77 = vunpack.c.l.b16 %v62
    %v78 = vpack.c.b16 %v75, %v74
    %v79 = vpack.c.b16 %v77, %v76
    %vm82 = vcmask 261120
    %v84 = vsel %vm82, %v58, 0
    %86 = vmatprep.subr.bf16.mxu0 0
    %87 = vmatpush1.bf16.msra.mxu0 %v78
    %88 = vmatprep.subr.bf16.mxu0 0
    %89 = vmatpush1.bf16.msra.mxu0 %v79
    %90 = vmatprep.subr.bf16.mxu0 0
    %91 = vmatpush1.bf16.msra.mxu0 0
    %92 = vmatprep.subr.bf16.mxu0 0
    %93 = vmatpush1.bf16.msra.mxu0 0
    %94 = vmatprep.subr.bf16.mxu0 0
    %95 = vmatpush1.bf16.msra.mxu0 0
    %96 = vmatprep.subr.bf16.mxu0 0
    %97 = vmatpush1.bf16.msra.mxu0 0
    %98 = vmatprep.subr.bf16.mxu0 0
    %99 = vmatpush1.bf16.msra.mxu0 0
    %100 = vmatprep.subr.bf16.mxu0 0
    %101 = vmatpush1.bf16.msra.mxu0 0
    %102 = vmatprep.subr.bf16.mxu0 0
    %103 = vmatpush1.bf16.msra.mxu0 0
    %104 = vmatprep.subr.bf16.mxu0 0
    %105 = vmatpush1.bf16.msra.mxu0 0
    %106 = vmatprep.subr.bf16.mxu0 0
    %107 = vmatpush1.bf16.msra.mxu0 0
    %108 = vmatprep.subr.bf16.mxu0 0
    %109 = vmatpush1.bf16.msra.mxu0 0
    %110 = vmatprep.subr.bf16.mxu0 0
    %111 = vmatpush1.bf16.msra.mxu0 0
    %112 = vmatprep.subr.bf16.mxu0 0
    %113 = vmatpush1.bf16.msra.mxu0 0
    %114 = vmatprep.subr.bf16.mxu0 0
    %115 = vmatpush1.bf16.msra.mxu0 0
    %116 = vmatprep.subr.bf16.mxu0 0
    %117 = vmatpush1.bf16.msra.mxu0 0
    %118 = vmatprep.mubr.bf16.mxu0 0
    %119 = vmatmul.mubr.bf16.gmra.mrb[0].mxu0 %v84
    %v120 = vpop.f32.mrb[0].mxu0
    %v121 = vadd.f32 %v68, %v120
    %v122 = vpop.f32.mrb[0].mxu0
    %v123 = vpop.f32.mrb[0].mxu0
    %v124 = vpop.f32.mrb[0].mxu0
    %125 = vdwg.mxu0
    %126 = vst [vmem:[#allocation8] sm:$0xff] %v121
    // Predicated region
    $region26: #{tpu_custom_call.1} parent=1 // pred_check
      _
    $region27: #{tpu_custom_call.1} parent=1 // pred_check_branch
      %128 = sbr.rel (0) target = $region29
    $region28: #{tpu_custom_call.1} parent=1 // pred_region
      %s130 = ssub.s32 128, 128
      %131 = vsyncadd [#allocation5], %s130
      %s133 = sshll.u32 [#allocation8], 4
      %s134 = int_to_ptr.vmem [resolvable:$true] %s133
      %136 = dma.vmem_to_hbm [thread:$0]  %s134, 128, %s3, [#allocation5]
    $region29: #{tpu_custom_call.1} parent=1 // pred_fallthru
      _
    // Predicated region
    $region30: #{tpu_custom_call.1} parent=1 // pred_check
      _
    $region31: #{tpu_custom_call.1} parent=1 // pred_check_branch
      %138 = sbr.rel (0) target = $region33
    $region32: #{tpu_custom_call.1} parent=1 // pred_region
      %139 = dma.done [#allocation5], 128
    $region33: #{tpu_custom_call.1} parent=1 // pred_fallthru
      _
    %140 = vsyncpa [#allocation4], 1
    %141 = vsyncpa [#allocation7], 1
    %142 = vsyncpa [#allocation5], 1

</llo_original>
